<compile_context>
chip_gen: v6e
topology: v6e:2x2x1
jax: 0.10.0
libtpu: 0.0.40
codegen_flags: <defaults>
</compile_context>

<pallas_src>
import math
from functools import partial

import jax
import jax.numpy as jnp
from jax.experimental import pallas as pl
from jax.experimental.pallas import tpu as pltpu


def _round_up(x, m):
    return ((x + m - 1) // m) * m


def _patch_embed_kernel(xT_ref, w_ref, b_ref, o_ref):
    # xT_ref: (K, TM) bf16   w_ref: (TN, K) bf16
    # b_ref : (TN, 1) f32    o_ref: (TN, TM) out dtype (bf16)
    acc = jnp.dot(w_ref[...], xT_ref[...], preferred_element_type=jnp.float32)
    o_ref[...] = (acc + b_ref[...]).astype(o_ref.dtype)


def _im2col_channels_major(x, kh, kw):
    # x: (B, C, H, W) -> (B, C*KH*KW, OH*OW), stride 1, no padding.
    # K index order is (c, kh, kw), matching weight.reshape(E, C*KH*KW).
    B, C, H, W = x.shape
    oh, ow = H - kh + 1, W - kw + 1
    patches = [x[:, :, i:i + oh, j:j + ow] for i in range(kh) for j in range(kw)]
    p = jnp.stack(patches, axis=2)                 # (B, C, KH*KW, OH, OW)
    return p.reshape(B, C * kh * kw, oh * ow), oh, ow


def patch_embed_forward(x, weight, bias, *, tile_m=2048, out_dtype=jnp.bfloat16):
    """x: (B, C, H, W); weight: (E, C, KH, KW); bias: (E,) -> (B, E, OH, OW)."""
    B, C, H, W = x.shape
    E, Cw, KH, KW = weight.shape
    assert C == Cw

    # bf16 GEMM operands (f32 MXU accumulation); bias stays f32.
    xT, oh, ow = _im2col_channels_major(x.astype(jnp.bfloat16), KH, KW)  # (B, K, P)
    P = oh * ow
    K = C * KH * KW                  # full block dim everywhere -> no padding
    w_mat = weight.reshape(E, K).astype(jnp.bfloat16)                    # (E, K)
    b_mat = bias.astype(jnp.float32).reshape(E, 1)                       # (E, 1)
    out_itemsize = jnp.dtype(out_dtype).itemsize

    # Per-generation VMEM budget (<= 3/4 of physical per-TC capacity:
    # ~48 MiB on v7x, ~96 MiB on v5e/v6e).
    try:
        vmem_cap = int(pltpu.get_tpu_info().vmem_capacity_bytes)
    except Exception:
        vmem_cap = 64 * 1024 * 1024   # conservative fallback (v7x per-TC size)
    vmem_budget = (3 * vmem_cap) // 4

    # E tiling: keep the whole weight resident whenever it is small (typical).
    if 2 * E * K * 2 <= 4 * 1024 * 1024:
        tile_n = E                    # full-dim block; DMA'd once per batch
    else:
        tile_n = max(128, min(512, _round_up(E, 128)))

    # P tiling: big, lane-dense tiles; capped by problem size and VMEM budget.
    tile_m = max(128, min(_round_up(tile_m, 128), _round_up(P, 128)))
    # v7x megacore: make sure there are >= 2 blocks to shard when possible.
    if B * pl.cdiv(E, tile_n) == 1 and P > 128:
        tile_m = min(tile_m, _round_up(pl.cdiv(P, 2), 128))

    def _vmem_est(tm):
        return (2 * K * tm * 2                   # xT blocks (bf16, double-buffered)
                + 2 * tile_n * K * 2             # weight (bf16)
                + 2 * tile_n * 128 * 4           # bias (f32, lane-padded)
                + 2 * tile_n * tm * out_itemsize)  # output blocks

    while tile_m > 128 and _vmem_est(tile_m) > vmem_budget:
        tile_m = max(128, _round_up(tile_m // 2, 128))

    grid = (B, pl.cdiv(E, tile_n), pl.cdiv(P, tile_m))    # P axis innermost
    vmem_limit = int(min(vmem_budget,
                         max(32 * 1024 * 1024, 2 * _vmem_est(tile_m))))

    out = pl.pallas_call(
        _patch_embed_kernel,
        out_shape=jax.ShapeDtypeStruct((B, E, P), out_dtype),
        grid_spec=pltpu.PrefetchScalarGridSpec(
            num_scalar_prefetch=0,
            grid=grid,
            in_specs=[
                pl.BlockSpec((None, K, tile_m), lambda b, j, i: (b, 0, i)),
                pl.BlockSpec((tile_n, K), lambda b, j, i: (j, 0)),
                pl.BlockSpec((tile_n, 1), lambda b, j, i: (j, 0)),
            ],
            out_specs=pl.BlockSpec((None, tile_n, tile_m),
                                   lambda b, j, i: (b, j, i)),
        ),
        compiler_params=pltpu.CompilerParams(
            dimension_semantics=("parallel", "parallel", "parallel"),
            vmem_limit_bytes=vmem_limit),
        cost_estimate=pl.CostEstimate(
            flops=2 * B * P * K * E,
            transcendentals=0,
            bytes_accessed=(B * K * P * 2            # im2col read (bf16)
                            + B * E * K * 2          # weight (once per batch/E-tile)
                            + E * 4                  # bias
                            + B * E * P * out_itemsize)),  # output store
    )(xT, w_mat, b_mat)

    # (B, E, OH*OW) -> (B, E, OH, OW): contiguous split, no transpose / copy.
    return out.reshape(B, E, oh, ow)


def init_patch_embed_params(key, patch_size, in_chans, embed_dim):
    """Deterministic init mimicking nn.Conv2d defaults (uniform +-1/sqrt(fan_in))."""
    kh, kw = patch_size
    fan_in = in_chans * kh * kw
    bound = 1.0 / math.sqrt(fan_in)
    kw_key, kb_key = jax.random.split(key)
    weight = jax.random.uniform(kw_key, (embed_dim, in_chans, kh, kw),
                                minval=-bound, maxval=bound, dtype=jnp.float32)
    bias = jax.random.uniform(kb_key, (embed_dim,),
                              minval=-bound, maxval=bound, dtype=jnp.float32)
    return weight, bias


if __name__ == "__main__":
    # Small deterministic example: B=2, C=4, H=W=16, patch_size=(4,4), embed_dim=32
    B, C, H, W = 2, 4, 16, 16
    patch_size = (4, 4)
    embed_dim = 32

    key = jax.random.PRNGKey(0)
    k_x, k_p = jax.random.split(key)
    x = jax.random.normal(k_x, (B, C, H, W), dtype=jnp.float32)
    weight, bias = init_patch_embed_params(k_p, patch_size, C, embed_dim)

    fwd = jax.jit(partial(patch_embed_forward, tile_m=2048))
    out = jax.block_until_ready(fwd(x, weight, bias))

    # Reference: XLA conv on the same bf16-rounded operands, f32 accumulation
    # (same semantics as PyTorch Conv2d, stride=(1,1), no padding).
    xb = x.astype(jnp.bfloat16).astype(jnp.float32)
    wb = weight.astype(jnp.bfloat16).astype(jnp.float32)
    ref = jax.lax.conv_general_dilated(
        xb, wb, window_strides=(1, 1), padding="VALID",
        dimension_numbers=("NCHW", "OIHW", "NCHW"),
        precision=jax.lax.Precision.HIGHEST,
    ) + bias.reshape(1, embed_dim, 1, 1)

    oh, ow = H - patch_size[0] + 1, W - patch_size[1] + 1
    assert out.shape == (B, embed_dim, oh, ow)
    assert out.dtype == jnp.bfloat16
    # Output is stored as bf16 (per perf review); tolerance covers one bf16 ulp.
    err = float(jnp.max(jnp.abs(out.astype(jnp.float32) - ref)))
    assert err < 5e-2, err

    print("KERNEL_OK")
</pallas_src>

<mosaic_0001>
module attributes {stable_mosaic.version = 11 : i64} {
  func.func @_patch_embed_kernel(%arg0: i32, %arg1: i32, %arg2: i32, %arg3: memref<1x64x256xbf16, #tpu.memory_space<vmem>>, %arg4: memref<32x64xbf16, #tpu.memory_space<vmem>>, %arg5: memref<32x1xf32, #tpu.memory_space<vmem>>, %arg6: memref<1x32x256xbf16, #tpu.memory_space<vmem>>) attributes {dimension_semantics = [#tpu.dimension_semantics<parallel>, #tpu.dimension_semantics<parallel>, #tpu.dimension_semantics<parallel>], iteration_bounds = array<i64: 2, 1, 1>, scalar_prefetch = 0 : i64, scratch_operands = 0 : i64, tpu.core_type = #tpu.core_type<tc>, window_params = [{transform_indices = @transform_0, window_bounds = array<i64: 1, 64, 256>}, {transform_indices = @transform_1, window_bounds = array<i64: 32, 64>}, {transform_indices = @transform_2, window_bounds = array<i64: 32, 1>}, {transform_indices = @transform_3, window_bounds = array<i64: 1, 32, 256>}]} {
    %c0 = arith.constant 0 : index
    %c0_0 = arith.constant 0 : index
    %0 = vector.load %arg4[%c0, %c0_0] : memref<32x64xbf16, #tpu.memory_space<vmem>>, vector<32x64xbf16>
    %c0_1 = arith.constant 0 : index
    %c0_2 = arith.constant 0 : index
    %c0_3 = arith.constant 0 : index
    %1 = vector.load %arg3[%c0_1, %c0_2, %c0_3] : memref<1x64x256xbf16, #tpu.memory_space<vmem>>, vector<1x64x256xbf16>
    %2 = vector.shape_cast %1 : vector<1x64x256xbf16> to vector<64x256xbf16>
    %cst = arith.constant dense<0.000000e+00> : vector<32x256xf32>
    %3 = tpu.matmul %0, %2, %cst {dimension_numbers = #tpu.dot_dimension_numbers<[1], [0], [0], [1], [0, 0, 1, 1], [], []>} : vector<32x64xbf16>, vector<64x256xbf16>, vector<32x256xf32> -> vector<32x256xf32>
    %c0_4 = arith.constant 0 : index
    %c0_5 = arith.constant 0 : index
    %4 = vector.load %arg5[%c0_4, %c0_5] : memref<32x1xf32, #tpu.memory_space<vmem>>, vector<32x1xf32>
    %5 = vector.broadcast %4 : vector<32x1xf32> to vector<32x256xf32>
    %6 = arith.addf %3, %5 : vector<32x256xf32>
    %7 = arith.truncf %6 : vector<32x256xf32> to vector<32x256xbf16>
    %c0_6 = arith.constant 0 : index
    %c0_7 = arith.constant 0 : index
    %c0_8 = arith.constant 0 : index
    %8 = vector.load %arg6[%c0_6, %c0_7, %c0_8] : memref<1x32x256xbf16, #tpu.memory_space<vmem>>, vector<1x32x256xbf16>
    %9 = vector.shape_cast %8 : vector<1x32x256xbf16> to vector<32x256xbf16>
    %10 = vector.shape_cast %7 : vector<32x256xbf16> to vector<1x32x256xbf16>
    tpu.vector_store %arg6[%c0_6, %c0_7, %c0_8], %10 {strides = array<i32>} : memref<1x32x256xbf16, #tpu.memory_space<vmem>>, vector<1x32x256xbf16>,
    return
  }
  func.func @transform_0(%arg0: i32, %arg1: i32, %arg2: i32) -> (i32, i32, i32) {
    %c0_i32 = arith.constant 0 : i32
    %c0_i32_0 = arith.constant 0 : i32
    return %arg0, %c0_i32, %arg2 : i32, i32, i32
  }
  func.func @transform_1(%arg0: i32, %arg1: i32, %arg2: i32) -> (i32, i32) {
    %c0_i32 = arith.constant 0 : i32
    %c0_i32_0 = arith.constant 0 : i32
    return %arg1, %c0_i32 : i32, i32
  }
  func.func @transform_2(%arg0: i32, %arg1: i32, %arg2: i32) -> (i32, i32) {
    %c0_i32 = arith.constant 0 : i32
    %c0_i32_0 = arith.constant 0 : i32
    return %arg1, %c0_i32 : i32, i32
  }
  func.func @transform_3(%arg0: i32, %arg1: i32, %arg2: i32) -> (i32, i32, i32) {
    %c0_i32 = arith.constant 0 : i32
    return %arg0, %arg1, %arg2 : i32, i32, i32
  }
}

</mosaic_0001>

<llo_original>
// kernel: patch_embed_forward.1
$region0: #{patch_embed_forward.1}
  #allocation0 [shape = 'u32[]', space=smem, size = 0x4, offset = 0x4, fixed_abs, tag = 'smem constant byte address 0x4 - core index']
  #allocation1 [shape = 'u32[144,128]{1,0:T(1,128)}', space=vmem, size = 0x12000, scoped, tag = 'internal scratch']
  %s0 = inlined_call_operand.vmem [shape: bf16[2,64,169], index: 0, kind: input, shape index: {}]
  %s1 = inlined_call_operand.vmem [shape: bf16[32,64], index: 1, kind: input, shape index: {}]
  %s2 = inlined_call_operand.vmem [shape: f32[32,1], index: 2, kind: input, shape index: {}]
  %s3 = inlined_call_operand.vmem [shape: bf16[2,32,169], index: 3, kind: output, shape index: {}]
  %s4 = sld [smem:[#allocation0]]
  $region45: #{patch_embed_forward.1} parent=0
    _
  %s6 = ssub.s32 1, %s4
  %s7 = scalar_select 0, %s6, %s4
  loop: start=0, step=1, limit=4
  $region2: #{patch_embed_forward.1} parent=0 // loop_pre_header
    _
  $region3: #{patch_embed_forward.1} parent=0 // loop_header
    %s9 = sphi 0, %s13
    %p10 = scmp.ge.s32.totalorder %s9, 4
    %s16 = sphi 0, %s35
    %s17 = sphi 0, %s31
    %s18 = sphi 0, %s27
    %s19 = sphi 0, %s16
    %s20 = sphi 0, %s17
    %s21 = sphi 0, %s18
    %s22 = sphi 0, %s19
    %s23 = sphi 0, %s20
    %s24 = sphi 0, %s21
    %s40 = sphi 0, %s42
    %s43 = sphi 0, %s40
    %s44 = sphi 0, %s43
    %s60 = sphi 0, %s44
    %s66 = sphi 0, %s68
    %s69 = sphi 0, %s66
    %s70 = sphi 0, %s69
    %s86 = sphi 0, %s70
    %s92 = sphi 0, %s94
    %s95 = sphi 0, %s92
    %s96 = sphi 0, %s95
    %s112 = sphi 0, %s96
    %s122 = sphi 0, %s124
    %s125 = sphi 0, %s122
    %s126 = sphi 0, %s125
    %s142 = sphi 0, %s126
  $region4: #{patch_embed_forward.1} parent=0 // loop_header_branch
    %12 = sbr.rel (%p10) target = $region8
  $region5: #{patch_embed_forward.1} parent=0 // loop_body
    %s14 = ssub.s32 %s9, 1
    %s15 = ssub.s32 %s9, 2
    %s25 = sadd.s32 1, %s18
    %p26 = scmp.ge.s32.totalorder %s25, 1
    %s27 = scalar_select %p26, 0, %s25
    %s28 = sadd.s32 1, %s17
    %s29 = scalar_select %p26, %s28, %s17
    %p30 = scmp.ge.s32.totalorder %s29, 1
    %s31 = scalar_select %p30, 0, %s29
    %s32 = sadd.s32 1, %s16
    %s33 = scalar_select %p30, %s32, %s16
    %p34 = scmp.ge.s32.totalorder %s33, 2
    %s35 = scalar_select %p34, 0, %s33
    %s36 = ssub.s32 %s16, %s35
    %s37 = ssub.s32 %s18, %s27
    %s38 = sor.u32 %s36, %s37
    %p39 = scmp.eq.s32.totalorder %s38, 0
    %s41 = sadd.s32 %s40, 1
    %s42 = scalar_select %p39, %s40, %s41
    %p45 = pneg %p39
    %p46 = scmp.eq.s32.totalorder %s9, 1
    %p47 = por %p45, %p46
    %p48 = scmp.ne.s32.totalorder %s40, %s43
    %p49 = scmp.eq.s32.totalorder %s9, 0
    %p50 = por %p48, %p49
    %p51 = scmp.ne.s32.totalorder %s40, %s43
    %p52 = scmp.eq.s32.totalorder %s14, 1
    %p53 = por %p51, %p52
    %p54 = scmp.ne.s32.totalorder %s43, %s44
    %p55 = scmp.eq.s32.totalorder %s14, 0
    %p56 = por %p54, %p55
    %p57 = scmp.ne.s32.totalorder %s43, %s44
    %p58 = scmp.eq.s32.totalorder %s15, 1
    %p59 = por %p57, %p58
    %p61 = scmp.ne.s32.totalorder %s44, %s60
    %p62 = scmp.eq.s32.totalorder %s15, 0
    %p63 = por %p61, %p62
    %s64 = ssub.s32 %s17, %s31
    %p65 = scmp.eq.s32.totalorder %s64, 0
    %s67 = sadd.s32 %s66, 1
    %s68 = scalar_select %p65, %s66, %s67
    %p71 = pneg %p65
    %p72 = scmp.eq.s32.totalorder %s9, 1
    %p73 = por %p71, %p72
    %p74 = scmp.ne.s32.totalorder %s66, %s69
    %p75 = scmp.eq.s32.totalorder %s9, 0
    %p76 = por %p74, %p75
    %p77 = scmp.ne.s32.totalorder %s66, %s69
    %p78 = scmp.eq.s32.totalorder %s14, 1
    %p79 = por %p77, %p78
    %p80 = scmp.ne.s32.totalorder %s69, %s70
    %p81 = scmp.eq.s32.totalorder %s14, 0
    %p82 = por %p80, %p81
    %p83 = scmp.ne.s32.totalorder %s69, %s70
    %p84 = scmp.eq.s32.totalorder %s15, 1
    %p85 = por %p83, %p84
    %p87 = scmp.ne.s32.totalorder %s70, %s86
    %p88 = scmp.eq.s32.totalorder %s15, 0
    %p89 = por %p87, %p88
    %s90 = ssub.s32 %s17, %s31
    %p91 = scmp.eq.s32.totalorder %s90, 0
    %s93 = sadd.s32 %s92, 1
    %s94 = scalar_select %p91, %s92, %s93
    %p97 = pneg %p91
    %p98 = scmp.eq.s32.totalorder %s9, 1
    %p99 = por %p97, %p98
    %p100 = scmp.ne.s32.totalorder %s92, %s95
    %p101 = scmp.eq.s32.totalorder %s9, 0
    %p102 = por %p100, %p101
    %p103 = scmp.ne.s32.totalorder %s92, %s95
    %p104 = scmp.eq.s32.totalorder %s14, 1
    %p105 = por %p103, %p104
    %p106 = scmp.ne.s32.totalorder %s95, %s96
    %p107 = scmp.eq.s32.totalorder %s14, 0
    %p108 = por %p106, %p107
    %p109 = scmp.ne.s32.totalorder %s95, %s96
    %p110 = scmp.eq.s32.totalorder %s15, 1
    %p111 = por %p109, %p110
    %p113 = scmp.ne.s32.totalorder %s96, %s112
    %p114 = scmp.eq.s32.totalorder %s15, 0
    %p115 = por %p113, %p114
    %s116 = ssub.s32 %s16, %s35
    %s117 = ssub.s32 %s17, %s31
    %s118 = sor.u32 %s116, %s117
    %s119 = ssub.s32 %s18, %s27
    %s120 = sor.u32 %s118, %s119
    %p121 = scmp.eq.s32.totalorder %s120, 0
    %s123 = sadd.s32 %s122, 1
    %s124 = scalar_select %p121, %s122, %s123
    %p127 = pneg %p121
    %p128 = scmp.eq.s32.totalorder %s9, 1
    %p129 = por %p127, %p128
    %p130 = scmp.ne.s32.totalorder %s122, %s125
    %p131 = scmp.eq.s32.totalorder %s9, 0
    %p132 = por %p130, %p131
    %p133 = scmp.ne.s32.totalorder %s122, %s125
    %p134 = scmp.eq.s32.totalorder %s14, 1
    %p135 = por %p133, %p134
    %p136 = scmp.ne.s32.totalorder %s125, %s126
    %p137 = scmp.eq.s32.totalorder %s14, 0
    %p138 = por %p136, %p137
    %p139 = scmp.ne.s32.totalorder %s125, %s126
    %p140 = scmp.eq.s32.totalorder %s15, 1
    %p141 = por %p139, %p140
    %p143 = scmp.ne.s32.totalorder %s126, %s142
    %p144 = scmp.eq.s32.totalorder %s15, 0
    %p145 = por %p143, %p144
    %p146 = scmp.le.s32.totalorder 1, %s9
    %p147 = scmp.lt.s32.totalorder %s9, 3
    %p148 = pnand %p146, %p147
    %p149 = pneg %p148
    // Predicated region
    $region9: #{patch_embed_forward.1} parent=5 // pred_check
      _
    $region10: #{patch_embed_forward.1} parent=5 // pred_check_branch
      %151 = sbr.rel (%p148) target = $region12
    $region11: #{patch_embed_forward.1} parent=5 // pred_region
      %s152 = ssub.s32 %s9, 1
      // Predicated region
      $region13: #{patch_embed_forward.1} parent=11 // pred_check
        %p153 = pneg %p82
      $region14: #{patch_embed_forward.1} parent=11 // pred_check_branch
        %155 = sbr.rel (%p153) target = $region16
      $region15: #{patch_embed_forward.1} parent=11 // pred_region
        %s156 = smul.u32 4, %s20
        %p157 = scmp.lt.s32.totalorder %s156, 3
        %s158 = scalar_select %p157, %s156, 3
        %s159 = smul.addr %s158, 4
        %s160 = scalar_lea.vmem %s1, %s159
        %s161 = smul.u32 4, %s20
      $region16: #{patch_embed_forward.1} parent=11 // pred_fallthru
        _
      // Predicated region
      $region17: #{patch_embed_forward.1} parent=11 // pred_check
        %p162 = pneg %p108
      $region18: #{patch_embed_forward.1} parent=11 // pred_check_branch
        %164 = sbr.rel (%p162) target = $region20
      $region19: #{patch_embed_forward.1} parent=11 // pred_region
        %s165 = smul.u32 4, %s20
        %p166 = scmp.lt.s32.totalorder %s165, 3
        %s167 = scalar_select %p166, %s165, 3
        %s168 = smul.addr %s167, 8
        %s169 = scalar_lea.vmem %s2, %s168
        %s170 = smul.u32 4, %s20
      $region20: #{patch_embed_forward.1} parent=11 // pred_fallthru
        _
    $region12: #{patch_embed_forward.1} parent=5 // pred_fallthru
      _
    %p171 = scmp.lt.s32.totalorder %s9, 2
    // Predicated region
    $region21: #{patch_embed_forward.1} parent=5 // pred_check
      %p172 = pneg %p171
    $region22: #{patch_embed_forward.1} parent=5 // pred_check_branch
      %174 = sbr.rel (%p172) target = $region24
    $region23: #{patch_embed_forward.1} parent=5 // pred_region
      // Predicated region
      $region25: #{patch_embed_forward.1} parent=23 // pred_check
        %p175 = pneg %p50
      $region26: #{patch_embed_forward.1} parent=23 // pred_check_branch
        %177 = sbr.rel (%p175) target = $region28
      $region27: #{patch_embed_forward.1} parent=23 // pred_region
        %s178 = smul.u32 2, %s18
        %p179 = scmp.lt.s32.totalorder %s16, 1
        %s180 = scalar_select %p179, %s16, 1
        %p181 = scmp.lt.s32.totalorder %s178, 1
        %s182 = scalar_select %p181, %s178, 1
        %s183 = smul.addr %s180, 16
        %s184 = sadd.s32 %s182, %s183
        %s185 = smul.addr %s184, 4
        %s186 = scalar_lea.vmem %s0, %s185
        %s187 = smul.u32 2, %s18
      $region28: #{patch_embed_forward.1} parent=23 // pred_fallthru
        _
    $region24: #{patch_embed_forward.1} parent=5 // pred_fallthru
      _
    %p188 = scmp.le.s32.totalorder 1, %s9
    %p189 = scmp.lt.s32.totalorder %s9, 3
    %p190 = pnand %p188, %p189
    %p191 = pneg %p190
    // Predicated region
    $region29: #{patch_embed_forward.1} parent=5 // pred_check
      _
    $region30: #{patch_embed_forward.1} parent=5 // pred_check_branch
      %193 = sbr.rel (%p190) target = $region32
    $region31: #{patch_embed_forward.1} parent=5 // pred_region
      %s194 = ssub.s32 %s9, 1
      %s195 = smul.u32 2, %s21
      %p196 = scmp.lt.s32.totalorder %s19, 1
      %s197 = scalar_select %p196, %s19, 1
      %p198 = scmp.lt.s32.totalorder %s195, 1
      %s199 = scalar_select %p198, %s195, 1
      %s200 = smul.addr %s197, 16
      %s201 = sadd.s32 %s199, %s200
      %s202 = smul.addr %s201, 4
      %s203 = scalar_lea.vmem %s0, %s202
      %p204 = pneg %p56
      %p205 = pneg %p53
      %s206 = smul.u32 4, %s20
      %p207 = scmp.lt.s32.totalorder %s206, 3
      %s208 = scalar_select %p207, %s206, 3
      %s209 = smul.addr %s208, 4
      %s210 = scalar_lea.vmem %s1, %s209
      %p211 = pneg %p82
      %p212 = pneg %p79
      %s213 = smul.u32 4, %s20
      %p214 = scmp.lt.s32.totalorder %s213, 3
      %s215 = scalar_select %p214, %s213, 3
      %s216 = smul.addr %s215, 8
      %s217 = scalar_lea.vmem %s2, %s216
      %p218 = pneg %p108
      %p219 = pneg %p105
      %p220 = pneg %p138
      %p221 = pneg %p135
      %s222 = smul.u32 4, %s20
      %s223 = smul.u32 2, %s21
      %p224 = scmp.lt.s32.totalorder %s19, 1
      %s225 = scalar_select %p224, %s19, 1
      %p226 = scmp.lt.s32.totalorder %s222, 3
      %s227 = scalar_select %p226, %s222, 3
      %p228 = scmp.lt.s32.totalorder %s223, 1
      %s229 = scalar_select %p228, %s223, 1
      %s230 = smul.addr %s227, 2
      %s231 = sadd.s32 %s229, %s230
      %s232 = smul.addr %s225, 8
      %s233 = sadd.s32 %s231, %s232
      %s234 = smul.addr %s233, 4
      %s235 = scalar_lea.vmem %s3, %s234
      %s236 = smul.u32 2, %s21
      %p237 = scmp.lt.s32.totalorder %s19, 1
      %s238 = scalar_select %p237, %s19, 1
      %p239 = scmp.lt.s32.totalorder %s236, 1
      %s240 = scalar_select %p239, %s236, 1
      %s241 = smul.addr %s238, 16
      %s242 = sadd.s32 %s240, %s241
      %s243 = smul.addr %s242, 4
      %s244 = scalar_lea.vmem %s0, %s243
      %s245 = smul.u32 2, %s21
      %s246 = smul.u32 4, %s20
      %p247 = scmp.lt.s32.totalorder %s246, 3
      %s248 = scalar_select %p247, %s246, 3
      %s249 = smul.addr %s248, 4
      %s250 = scalar_lea.vmem %s1, %s249
      %s251 = smul.u32 4, %s20
      %s252 = smul.u32 4, %s20
      %p253 = scmp.lt.s32.totalorder %s252, 3
      %s254 = scalar_select %p253, %s252, 3
      %s255 = smul.addr %s254, 8
      %s256 = scalar_lea.vmem %s2, %s255
      %s257 = smul.u32 4, %s20
      %s258 = smul.u32 4, %s20
      %s259 = smul.u32 2, %s21
      %p260 = scmp.lt.s32.totalorder %s19, 1
      %s261 = scalar_select %p260, %s19, 1
      %p262 = scmp.lt.s32.totalorder %s258, 3
      %s263 = scalar_select %p262, %s258, 3
      %p264 = scmp.lt.s32.totalorder %s259, 1
      %s265 = scalar_select %p264, %s259, 1
      %s266 = smul.addr %s263, 2
      %s267 = sadd.s32 %s265, %s266
      %s268 = smul.addr %s261, 8
      %s269 = sadd.s32 %s267, %s268
      %s270 = smul.addr %s269, 4
      %s271 = scalar_lea.vmem %s3, %s270
      %s272 = smul.u32 4, %s20
      %s273 = smul.u32 2, %s21
      %v275 = vld [vmem:[%s250] sm:$0xf]
      %v276 = vld [vmem:[%s250 + $0x4] sm:$0xf]
      %v277 = vld [vmem:[%s250 + $0x8] sm:$0xf]
      %v278 = vld [vmem:[%s250 + $0xc] sm:$0xf]
      %v279 = vld [vmem:[%s244] sm:$0xff]
      %v280 = vld [vmem:[%s244 + $0x8] sm:$0xff]
      %v281 = vld [vmem:[%s244 + $0x10] sm:$0xff]
      %v282 = vld [vmem:[%s244 + $0x18] sm:$0xff]
      %v283 = vld [vmem:[%s244 + $0x20] sm:$0xff]
      %v284 = vld [vmem:[%s244 + $0x28] sm:$0xff]
      %v285 = vld [vmem:[%s244 + $0x30] sm:$0xff]
      %v286 = vld [vmem:[%s244 + $0x38] sm:$0xff]
      %v287 = vld [vmem:[%s256] sm:$0xff]
      %v288 = vld [vmem:[%s256 + $0x8] sm:$0xff]
      %v289 = vld [vmem:[%s256 + $0x10] sm:$0xff]
      %v290 = vld [vmem:[%s256 + $0x18] sm:$0xff]
      %292 = vset.pattern.permute.xlu0 0
      %293 = vperm.xlu0 %292, %v287
      %v294 = vpop.permute.xlu0 %293
      %297 = vset.pattern.permute.xlu0 0
      %298 = vperm.xlu0 %297, %v288
      %v299 = vpop.permute.xlu0 %298
      %302 = vset.pattern.permute.xlu0 0
      %303 = vperm.xlu0 %302, %v289
      %v304 = vpop.permute.xlu0 %303
      %307 = vset.pattern.permute.xlu0 0
      %308 = vperm.xlu0 %307, %v290
      %v309 = vpop.permute.xlu0 %308
      %v315 = vunpack.c.l.b16 %v275
      %v316 = vunpack.c.l.b16 %v276
      %v317 = vunpack.c.l.b16 %v277
      %v318 = vunpack.c.l.b16 %v278
      %v319 = vpack.c.b16 %v316, %v315
      %v320 = vpack.c.b16 %v318, %v317
      %v329 = vunpack.c.l.b16 %v279
      %v330 = vunpack.c.h.b16 %v279
      %v331 = vunpack.c.l.b16 %v280
      %v332 = vunpack.c.h.b16 %v280
      %v333 = vunpack.c.l.b16 %v281
      %v334 = vunpack.c.h.b16 %v281
      %v335 = vunpack.c.l.b16 %v282
      %v336 = vunpack.c.h.b16 %v282
      %v337 = vunpack.c.l.b16 %v283
      %v338 = vunpack.c.h.b16 %v283
      %v339 = vunpack.c.l.b16 %v284
      %v340 = vunpack.c.h.b16 %v284
      %v341 = vunpack.c.l.b16 %v285
      %v342 = vunpack.c.h.b16 %v285
      %v343 = vunpack.c.l.b16 %v286
      %v344 = vunpack.c.h.b16 %v286
      %v345 = vpack.c.b16 %v331, %v329
      %v346 = vpack.c.b16 %v332, %v330
      %v347 = vpack.c.b16 %v335, %v333
      %v348 = vpack.c.b16 %v336, %v334
      %v349 = vpack.c.b16 %v339, %v337
      %v350 = vpack.c.b16 %v340, %v338
      %v351 = vpack.c.b16 %v343, %v341
      %v352 = vpack.c.b16 %v344, %v342
      %vm361 = vcmask 523264
      %v363 = vsel %vm361, %v319, 0
      %v366 = vsel %vm361, %v320, 0
      %368 = vmatprep.subr.bf16.mxu0 0
      %369 = vmatpush1.bf16.msra.mxu0 0
      %370 = vmatprep.subr.bf16.mxu0 0
      %371 = vmatpush1.bf16.msra.mxu0 0
      %372 = vmatprep.subr.bf16.mxu0 0
      %373 = vmatpush1.bf16.msra.mxu0 0
      %374 = vmatprep.subr.bf16.mxu0 0
      %375 = vmatpush1.bf16.msra.mxu0 0
      %376 = vmatprep.subr.bf16.mxu0 %v352
      %377 = vmatpush1.bf16.msra.mxu0 %v351
      %378 = vmatprep.subr.bf16.mxu0 %v350
      %379 = vmatpush1.bf16.msra.mxu0 %v349
      %380 = vmatprep.subr.bf16.mxu0 %v348
      %381 = vmatpush1.bf16.msra.mxu0 %v347
      %382 = vmatprep.subr.bf16.mxu0 %v346
      %383 = vmatpush1.bf16.msra.mxu0 %v345
      %384 = vmatprep.subr.bf16.mxu0 0
      %385 = vmatpush2.bf16.msra.mxu0 0
      %386 = vmatprep.subr.bf16.mxu0 0
      %387 = vmatpush2.bf16.msra.mxu0 0
      %388 = vmatprep.subr.bf16.mxu0 0
      %389 = vmatpush2.bf16.msra.mxu0 0
      %390 = vmatprep.subr.bf16.mxu0 0
      %391 = vmatpush2.bf16.msra.mxu0 0
      %392 = vmatprep.subr.bf16.mxu0 0
      %393 = vmatpush2.bf16.msra.mxu0 0
      %394 = vmatprep.subr.bf16.mxu0 0
      %395 = vmatpush2.bf16.msra.mxu0 0
      %396 = vmatprep.subr.bf16.mxu0 0
      %397 = vmatpush2.bf16.msra.mxu0 0
      %398 = vmatprep.subr.bf16.mxu0 0
      %399 = vmatpush2.bf16.msra.mxu0 0
      %400 = vmatprep.mubr.bf16.mxu0 0
      %401 = vmatmul.mubr.bf16.gmra.mxu0 %v363
      %v402 = vpop.f32.mrf.mxu0
      %v403 = vadd.f32 %v294, %v402
      %v404 = vpop.f32.mrf.mxu0
      %v405 = vadd.f32 %v294, %v404
      %v406 = vpop.f32.mrf.mxu0
      %v407 = vadd.f32 %v299, %v406
      %v408 = vpop.f32.mrf.mxu0
      %v409 = vadd.f32 %v299, %v408
      %410 = vmatprep.mubr.bf16.mxu0 0
      %411 = vmatmul.mubr.bf16.gmra.mxu0 %v366
      %v412 = vpop.f32.mrf.mxu0
      %v413 = vadd.f32 %v304, %v412
      %v414 = vpop.f32.mrf.mxu0
      %v415 = vadd.f32 %v304, %v414
      %v416 = vpop.f32.mrf.mxu0
      %v417 = vadd.f32 %v309, %v416
      %v418 = vpop.f32.mrf.mxu0
      %v419 = vadd.f32 %v309, %v418
      %420 = vdwg.mxu0
      %v421 = vpack.c.bf16 %v407, %v403
      %v422 = vpack.c.bf16 %v409, %v405
      %v423 = vpack.c.bf16 %v417, %v413
      %v424 = vpack.c.bf16 %v419, %v415
      %v429 = vunpack.c.l.b16 %v421
      %v430 = vunpack.c.l.b16 %v422
      %v431 = vunpack.c.h.b16 %v421
      %v432 = vunpack.c.h.b16 %v422
      %v433 = vunpack.c.l.b16 %v423
      %v434 = vunpack.c.l.b16 %v424
      %v435 = vunpack.c.h.b16 %v423
      %v436 = vunpack.c.h.b16 %v424
      %v437 = vpack.c.b16 %v430, %v429
      %v438 = vpack.c.b16 %v432, %v431
      %v439 = vpack.c.b16 %v434, %v433
      %v440 = vpack.c.b16 %v436, %v435
      %445 = vst [vmem:[%s271] sm:$0xff] %v437
      %446 = vst [vmem:[%s271 + $0x8] sm:$0xff] %v438
      %447 = vst [vmem:[%s271 + $0x10] sm:$0xff] %v439
      %448 = vst [vmem:[%s271 + $0x18] sm:$0xff] %v440
      %s449 = smul.u32 4, %s20
      %s450 = smul.u32 2, %s21
      %p451 = scmp.lt.s32.totalorder %s19, 1
      %s452 = scalar_select %p451, %s19, 1
      %p453 = scmp.lt.s32.totalorder %s449, 3
      %s454 = scalar_select %p453, %s449, 3
      %p455 = scmp.lt.s32.totalorder %s450, 1
      %s456 = scalar_select %p455, %s450, 1
      %s457 = smul.addr %s454, 2
      %s458 = sadd.s32 %s456, %s457
      %s459 = smul.addr %s452, 8
      %s460 = sadd.s32 %s458, %s459
      %s461 = smul.addr %s460, 4
      %s462 = scalar_lea.vmem %s3, %s461
      // Predicated region
      $region33: #{patch_embed_forward.1} parent=31 // pred_check
        %p463 = pneg %p135
      $region34: #{patch_embed_forward.1} parent=31 // pred_check_branch
        %465 = sbr.rel (%p463) target = $region36
      $region35: #{patch_embed_forward.1} parent=31 // pred_region
        %s466 = smul.u32 4, %s20
        %s467 = smul.u32 2, %s21
      $region36: #{patch_embed_forward.1} parent=31 // pred_fallthru
        _
    $region32: #{patch_embed_forward.1} parent=5 // pred_fallthru
      _
    %p468 = scmp.le.s32.totalorder 2, %s9
    // Predicated region
    $region37: #{patch_embed_forward.1} parent=5 // pred_check
      %p469 = pneg %p468
    $region38: #{patch_embed_forward.1} parent=5 // pred_check_branch
      %471 = sbr.rel (%p469) target = $region40
    $region39: #{patch_embed_forward.1} parent=5 // pred_region
      %s472 = ssub.s32 %s9, 2
      // Predicated region
      $region41: #{patch_embed_forward.1} parent=39 // pred_check
        %p473 = pneg %p141
      $region42: #{patch_embed_forward.1} parent=39 // pred_check_branch
        %475 = sbr.rel (%p473) target = $region44
      $region43: #{patch_embed_forward.1} parent=39 // pred_region
        %s476 = smul.u32 4, %s23
        %s477 = smul.u32 2, %s24
        %p478 = scmp.lt.s32.totalorder %s22, 1
        %s479 = scalar_select %p478, %s22, 1
        %p480 = scmp.lt.s32.totalorder %s476, 3
        %s481 = scalar_select %p480, %s476, 3
        %p482 = scmp.lt.s32.totalorder %s477, 1
        %s483 = scalar_select %p482, %s477, 1
        %s484 = smul.addr %s481, 2
        %s485 = sadd.s32 %s483, %s484
        %s486 = smul.addr %s479, 8
        %s487 = sadd.s32 %s485, %s486
        %s488 = smul.addr %s487, 4
        %s489 = scalar_lea.vmem %s3, %s488
      $region44: #{patch_embed_forward.1} parent=39 // pred_fallthru
        _
    $region40: #{patch_embed_forward.1} parent=5 // pred_fallthru
      _
  $region6: #{patch_embed_forward.1} parent=0 // loop_footer
    %s13 = sadd.s32 1, %s9
  $region7: #{patch_embed_forward.1} parent=0 // loop_footer_branch
    %8 = sbr.rel target = $region3
  $region8: #{patch_embed_forward.1} parent=0 // loop_exit
    _

</llo_original>
